<compile_context>
chip_gen: v6e
topology: v6e:2x2x1
jax: 0.10.0
libtpu: 0.0.40
codegen_flags: <defaults>
</compile_context>

<pallas_src>
import functools
import itertools
import numpy as np
import jax
import jax.numpy as jnp
from jax.experimental import pallas as pl
from jax.experimental.pallas import tpu as pltpu

KMER = 3                # kmer_size
NK = 4 ** KMER          # 64 kmer vocabulary entries
VOCAB = 5 + NK          # 5 special tokens + kmers (kmer tokens live at ids 5..)
HIDDEN = 32
LEFT_SPECIAL = 2
RIGHT_SPECIAL = 1


def build_prb_filter(kmer_size):
    # Replicates ReconstructionModel.create_prb_filter (vocab[kmer] = 5 + itertools idx).
    kmer_list = ["".join(x) for x in itertools.product("ACGT", repeat=kmer_size)]
    nt_mapping = {"A": 0, "C": 1, "G": 2, "T": 3}
    prb_filter = np.zeros((kmer_size, 4 ** kmer_size, 4), dtype=np.float32)
    for tok, kmer in enumerate(kmer_list):
        for idx, nt in enumerate(kmer):
            prb_filter[kmer_size - 1 - idx, tok, nt_mapping[nt]] = 1.0
    return prb_filter  # numpy (K, NK, 4)


def recon_kernel(h_ref, w_ref, b_ref, fw_ref, out_ref, *, kmer):
    # h_ref : (K*TB, H) when grid==1 (pre-flattened) else (K, TB, H)   masked hidden states
    # w_ref : (H, NK)        prediction-head weight, column-sliced [5:5+NK]   (f32/bf16)
    # b_ref : (1, NK)        prediction-head bias slice                       (f32)
    # fw_ref: (K*NK, 4)      fw[k*NK+n, f] = prb_filter[k, n, f] / K          (f32)
    # out_ref: (TB, 4)       nucleotide probabilities                          (f32)
    if h_ref.ndim == 3:
        k_, tb, hidden = h_ref.shape
        hf = h_ref[...].reshape(k_ * tb, hidden)         # tb%8==0 -> tile-aligned merge
    else:
        rows, hidden = h_ref.shape
        tb = rows // kmer
        hf = h_ref[...]

    # (1) Single fused prediction-head matmul over all kmer (mask) positions (MXU,
    #     f32 accumulation); bias added once.
    logits = jnp.dot(hf, w_ref[...], preferred_element_type=jnp.float32)
    logits = logits + b_ref[...]                         # (K*TB, NK), f32

    # (2) Softmax over the kmer-vocab axis (dim=2 in the PyTorch code), f32.
    #     Exact reciprocal on the EUP slot (one op; no approx-mode error).
    m = jnp.max(logits, axis=-1, keepdims=True)
    e = jnp.exp(logits - m)
    denom = jnp.sum(e, axis=-1, keepdims=True)
    p = e * pl.reciprocal(denom, approx=False)           # (K*TB, NK)

    # (3) Fused prb_filter contraction + kmer-sum + /kmer scale:
    #     lane-concat the K sublane slabs -> (TB, K*NK), multiply by the stacked,
    #     pre-scaled filter (K*NK, 4).  out[b,f] = sum_{k,n} p[k,b,n]*F[k,n,f]/K.
    p_cat = jnp.concatenate([p[k * tb:(k + 1) * tb, :] for k in range(kmer)], axis=1)
    out_ref[...] = jnp.dot(p_cat, fw_ref[...], preferred_element_type=jnp.float32)


def init_reconstruction_head(w_out, b_out, kmer_size=KMER, *, use_bf16=True):
    """Build the constant kernel operands ONCE (not per forward call).

    use_bf16=True is the right default on v5e/v6e/v7x alike: only the logits matmul
    runs in bf16 (f32 accumulate); softmax and the filter contraction stay f32.
    """
    nk = 4 ** kmer_size
    prb = build_prb_filter(kmer_size)                                   # (K, NK, 4)
    # Stacked + pre-scaled filter: fw[k*NK + n, f] = prb[k, n, f] / K.
    fw = (prb.reshape(kmer_size * nk, 4) / float(kmer_size)).astype(np.float32)
    mat_dtype = jnp.bfloat16 if use_bf16 else jnp.float32
    w_sel = np.asarray(w_out)[:, 5:5 + nk]
    b_sel = np.asarray(b_out)[5:5 + nk].reshape(1, nk)
    return dict(
        kmer=kmer_size,
        nk=nk,
        use_bf16=use_bf16,
        w=jnp.asarray(w_sel, dtype=mat_dtype),
        b=jnp.asarray(b_sel, dtype=jnp.float32),
        fw=jnp.asarray(fw),
        prb_filter=jnp.asarray(prb),   # kept only for reference computations
    )


def reconstruction_forward(h_masked, params, *, tb=None, num_tensorcores=1):
    # h_masked: (KMER, B, HIDDEN) hidden states at the masked positions.
    kmer, nk = params["kmer"], params["nk"]
    k_, batch, hidden = h_masked.shape
    assert k_ == kmer

    if tb is None:
        if (num_tensorcores > 1 and batch >= 16 * num_tensorcores
                and batch % (8 * num_tensorcores) == 0):
            tb = batch // num_tensorcores   # v7x: one batch tile per TensorCore
        else:
            tb = batch                      # v5e/v6e single TC: grid=(1,), zero step overhead
    assert batch % tb == 0 and tb % 8 == 0

    mat_dtype = jnp.bfloat16 if params["use_bf16"] else jnp.float32
    h_in = h_masked.astype(mat_dtype)
    grid = batch // tb
    itemsize = 2 if params["use_bf16"] else 4

    # Advisory cost estimate so XLA can schedule/overlap this tiny custom call.
    cost = pl.CostEstimate(
        flops=2 * kmer * batch * hidden * nk + 2 * batch * (kmer * nk) * 4,
        transcendentals=kmer * batch * nk,
        bytes_accessed=(kmer * batch * hidden * itemsize   # h
                        + hidden * nk * itemsize           # w
                        + nk * 4                           # b
                        + kmer * nk * 4 * 4                # fw
                        + batch * 4 * 4),                  # out
    )

    if grid == 1:
        # Pre-flatten in the wrapper (free, row-major) so the kernel block is 2-D.
        h_arg = h_in.reshape(kmer * batch, hidden)
        h_spec = pl.BlockSpec((kmer * batch, hidden), lambda i: (0, 0))
    else:
        h_arg = h_in
        h_spec = pl.BlockSpec((kmer, tb, hidden), lambda i: (0, i, 0))

    kernel = functools.partial(recon_kernel, kmer=kmer)
    return pl.pallas_call(
        kernel,
        out_shape=jax.ShapeDtypeStruct((batch, 4), jnp.float32),
        grid_spec=pltpu.PrefetchScalarGridSpec(
            num_scalar_prefetch=0,
            grid=(grid,),
            in_specs=[
                h_spec,
                # Constant-index operands: Pallas skips re-DMA when the block index
                # does not change, so they stay VMEM-resident across grid steps.
                pl.BlockSpec((hidden, nk), lambda i: (0, 0)),
                pl.BlockSpec((1, nk), lambda i: (0, 0)),
                pl.BlockSpec((kmer * nk, 4), lambda i: (0, 0)),
            ],
            # Output is only B x 4 floats total; lane-padding to 128 would inflate
            # HBM writes ~32x for no gain at these sizes.
            out_specs=pl.BlockSpec((tb, 4), lambda i: (i, 0)),
        ),
        compiler_params=pltpu.CompilerParams(dimension_semantics=("parallel",)),
        cost_estimate=cost,
    )(h_arg, params["w"], params["b"], params["fw"])


if __name__ == "__main__":
    key = jax.random.PRNGKey(0)
    B, S = 16, 24
    k_emb, k_pos, k_w, k_b, k_tok = jax.random.split(key, 5)

    # Deterministic surrogate LM parameters.
    word_emb = jax.random.normal(k_emb, (VOCAB, HIDDEN), jnp.float32) * 0.5
    pos_emb = jax.random.normal(k_pos, (S, HIDDEN), jnp.float32) * 0.5
    w_out = jax.random.normal(k_w, (HIDDEN, VOCAB), jnp.float32) * 0.3
    b_out = jax.random.normal(k_b, (VOCAB,), jnp.float32) * 0.1

    # Tokens: [special, special] kmer tokens ... [special], with KMER consecutive MASK(=4)
    tokens = jax.random.randint(k_tok, (B, S), 5, VOCAB)
    tokens = tokens.at[:, 0].set(1).at[:, 1].set(2)
    tokens = tokens.at[:, -1].set(3)
    interior = S - LEFT_SPECIAL - RIGHT_SPECIAL - KMER + 1
    starts = LEFT_SPECIAL + (jnp.arange(B) % interior)
    col = jnp.arange(S)[None, :]
    mask = (col >= starts[:, None]) & (col < (starts[:, None] + KMER))
    tokens = jnp.where(mask, 4, tokens)

    # _get_lm_output: predictions[tokens == 4] -> masked positions per row, ascending
    # (matches torch row-major boolean indexing); each row has exactly KMER masks.
    pos = jnp.argsort(jnp.where(tokens == 4, 0, 1), axis=1, stable=True)[:, :KMER]  # (B, KMER)

    # Surrogate LM hidden states at the masked positions (glue: gather only).
    tok_at = jnp.take_along_axis(tokens, pos, axis=1)             # (B, KMER)
    h = word_emb[tok_at] + pos_emb[pos]                           # (B, KMER, HIDDEN)
    h_masked = jnp.transpose(h, (1, 0, 2)).astype(jnp.float32)    # (KMER, B, HIDDEN)

    # --- References -----------------------------------------------------------
    # Exact reference in numpy float64 (replicates the PyTorch return_logits=False path).
    h_np = np.asarray(h, dtype=np.float64)
    logits_np = np.einsum("bkh,hv->bkv", h_np, np.asarray(w_out, np.float64)) \
        + np.asarray(b_out, np.float64)
    logits_np = logits_np[..., 5:5 + NK]
    e_np = np.exp(logits_np - logits_np.max(axis=2, keepdims=True))
    prbs_np = e_np / e_np.sum(axis=2, keepdims=True)
    prb_np = build_prb_filter(KMER).astype(np.float64)
    ref_f64 = (prbs_np[..., None] * prb_np[None]).sum(axis=(1, 2)) / KMER

    # bf16 (autocast-style) reference with the same input quantization as the fast path.
    prb_j = jnp.asarray(build_prb_filter(KMER))
    w_sel_bf = jnp.asarray(np.asarray(w_out)[:, 5:5 + NK], dtype=jnp.bfloat16)
    logits_bf = jnp.einsum("bkh,hn->bkn", h.astype(jnp.bfloat16), w_sel_bf,
                           preferred_element_type=jnp.float32) + b_out[5:5 + NK]
    kmer_prbs_bf = jax.nn.softmax(logits_bf, axis=2)
    ref_bf16 = (kmer_prbs_bf[..., None] * prb_j[None]).sum(axis=(1, 2)) / KMER

    # --- Kernel ---------------------------------------------------------------
    # Exact f32 path: validates the kernel math.
    params_f32 = init_reconstruction_head(w_out, b_out, KMER, use_bf16=False)
    out_exact = reconstruction_forward(h_masked, params_f32)
    out_exact = jax.block_until_ready(out_exact)
    assert out_exact.shape == (B, 4) and out_exact.dtype == jnp.float32
    assert np.allclose(np.asarray(out_exact), ref_f64, atol=5e-4, rtol=1e-3)

    # Fast bf16 path (default on all generations, incl. v5e): compared against the
    # matching bf16 reference; accumulation order is the only remaining delta.
    params_bf16 = init_reconstruction_head(w_out, b_out, KMER, use_bf16=True)
    out_fast = reconstruction_forward(h_masked, params_bf16)
    out_fast = jax.block_until_ready(out_fast)
    assert out_fast.shape == (B, 4) and out_fast.dtype == jnp.float32
    assert jnp.allclose(out_fast, ref_bf16, atol=2e-3, rtol=2e-3)

    print("KERNEL_OK")
</pallas_src>

<mosaic_0001>
module attributes {stable_mosaic.version = 11 : i64} {
  func.func @recon_kernel(%arg0: i32, %arg1: memref<48x32xf32, #tpu.memory_space<vmem>>, %arg2: memref<32x64xf32, #tpu.memory_space<vmem>>, %arg3: memref<1x64xf32, #tpu.memory_space<vmem>>, %arg4: memref<192x4xf32, #tpu.memory_space<vmem>>, %arg5: memref<16x4xf32, #tpu.memory_space<vmem>>) attributes {dimension_semantics = [#tpu.dimension_semantics<parallel>], iteration_bounds = array<i64: 1>, scalar_prefetch = 0 : i64, scratch_operands = 0 : i64, tpu.core_type = #tpu.core_type<tc>, window_params = [{pipeline_mode = #tpu.pipeline_mode<synchronous>, transform_indices = @transform_0, window_bounds = array<i64: 48, 32>}, {pipeline_mode = #tpu.pipeline_mode<synchronous>, transform_indices = @transform_1, window_bounds = array<i64: 32, 64>}, {pipeline_mode = #tpu.pipeline_mode<synchronous>, transform_indices = @transform_2, window_bounds = array<i64: 1, 64>}, {pipeline_mode = #tpu.pipeline_mode<synchronous>, transform_indices = @transform_3, window_bounds = array<i64: 192, 4>}, {transform_indices = @transform_4, window_bounds = array<i64: 16, 4>}]} {
    %c0 = arith.constant 0 : index
    %c0_0 = arith.constant 0 : index
    %0 = vector.load %arg1[%c0, %c0_0] : memref<48x32xf32, #tpu.memory_space<vmem>>, vector<48x32xf32>
    %c0_1 = arith.constant 0 : index
    %c0_2 = arith.constant 0 : index
    %1 = vector.load %arg2[%c0_1, %c0_2] : memref<32x64xf32, #tpu.memory_space<vmem>>, vector<32x64xf32>
    %cst = arith.constant dense<0.000000e+00> : vector<48x64xf32>
    %2 = tpu.matmul %0, %1, %cst {dimension_numbers = #tpu.dot_dimension_numbers<[1], [0], [0], [1], [0, 0, 1, 1], [], []>} : vector<48x32xf32>, vector<32x64xf32>, vector<48x64xf32> -> vector<48x64xf32>
    %c0_3 = arith.constant 0 : index
    %c0_4 = arith.constant 0 : index
    %3 = vector.load %arg3[%c0_3, %c0_4] : memref<1x64xf32, #tpu.memory_space<vmem>>, vector<1x64xf32>
    %4 = vector.broadcast %3 : vector<1x64xf32> to vector<48x64xf32>
    %5 = arith.addf %2, %4 : vector<48x64xf32>
    %cst_5 = arith.constant dense<0xFF800000> : vector<48xf32>
    %6 = vector.multi_reduction <maximumf>, %5, %cst_5 [1] : vector<48x64xf32> to vector<48xf32>
    %7 = vector.shape_cast %6 : vector<48xf32> to vector<48x1xf32>
    %8 = vector.broadcast %7 : vector<48x1xf32> to vector<48x64xf32>
    %9 = arith.subf %5, %8 : vector<48x64xf32>
    %10 = math.exp %9 : vector<48x64xf32>
    %cst_6 = arith.constant dense<0.000000e+00> : vector<48xf32>
    %11 = vector.multi_reduction <add>, %10, %cst_6 [1] : vector<48x64xf32> to vector<48xf32>
    %12 = vector.shape_cast %11 : vector<48xf32> to vector<48x1xf32>
    %13 = tpu.reciprocal %12 : vector<48x1xf32> -> vector<48x1xf32>
    %14 = vector.broadcast %13 : vector<48x1xf32> to vector<48x64xf32>
    %15 = arith.mulf %10, %14 : vector<48x64xf32>
    %16 = vector.extract_strided_slice %15 {offsets = [0, 0], sizes = [16, 64], strides = [1, 1]} : vector<48x64xf32> to vector<16x64xf32>
    %17 = vector.extract_strided_slice %15 {offsets = [16, 0], sizes = [16, 64], strides = [1, 1]} : vector<48x64xf32> to vector<16x64xf32>
    %18 = vector.extract_strided_slice %15 {offsets = [32, 0], sizes = [16, 64], strides = [1, 1]} : vector<48x64xf32> to vector<16x64xf32>
    %19 = tpu.concatenate %16, %17, %18 in 1 : vector<16x64xf32>, vector<16x64xf32>, vector<16x64xf32> -> vector<16x192xf32>
    %c0_7 = arith.constant 0 : index
    %c0_8 = arith.constant 0 : index
    %20 = vector.load %arg4[%c0_7, %c0_8] : memref<192x4xf32, #tpu.memory_space<vmem>>, vector<192x4xf32>
    %cst_9 = arith.constant dense<0.000000e+00> : vector<16x4xf32>
    %21 = tpu.matmul %19, %20, %cst_9 {dimension_numbers = #tpu.dot_dimension_numbers<[1], [0], [0], [1], [0, 0, 1, 1], [], []>} : vector<16x192xf32>, vector<192x4xf32>, vector<16x4xf32> -> vector<16x4xf32>
    %c0_10 = arith.constant 0 : index
    %c0_11 = arith.constant 0 : index
    %22 = vector.load %arg5[%c0_10, %c0_11] : memref<16x4xf32, #tpu.memory_space<vmem>>, vector<16x4xf32>
    tpu.vector_store %arg5[%c0_10, %c0_11], %21 {strides = array<i32>} : memref<16x4xf32, #tpu.memory_space<vmem>>, vector<16x4xf32>,
    return
  }
  func.func @transform_0(%arg0: i32) -> (i32, i32) {
    %c0_i32 = arith.constant 0 : i32
    %c0_i32_0 = arith.constant 0 : i32
    %c0_i32_1 = arith.constant 0 : i32
    return %c0_i32, %c0_i32_0 : i32, i32
  }
  func.func @transform_1(%arg0: i32) -> (i32, i32) {
    %c0_i32 = arith.constant 0 : i32
    %c0_i32_0 = arith.constant 0 : i32
    %c0_i32_1 = arith.constant 0 : i32
    return %c0_i32, %c0_i32_0 : i32, i32
  }
  func.func @transform_2(%arg0: i32) -> (i32, i32) {
    %c0_i32 = arith.constant 0 : i32
    %c0_i32_0 = arith.constant 0 : i32
    %c0_i32_1 = arith.constant 0 : i32
    return %c0_i32, %c0_i32_0 : i32, i32
  }
  func.func @transform_3(%arg0: i32) -> (i32, i32) {
    %c0_i32 = arith.constant 0 : i32
    %c0_i32_0 = arith.constant 0 : i32
    %c0_i32_1 = arith.constant 0 : i32
    return %c0_i32, %c0_i32_0 : i32, i32
  }
  func.func @transform_4(%arg0: i32) -> (i32, i32) {
    %c0_i32 = arith.constant 0 : i32
    %c0_i32_0 = arith.constant 0 : i32
    return %arg0, %c0_i32 : i32, i32
  }
}

</mosaic_0001>

<llo_original>
// kernel: tpu_custom_call.1
$region0: #{tpu_custom_call.1}
  #allocation0 [shape = 'u32[]', space=smem, size = 0x4, offset = 0x4, fixed_abs, tag = 'smem constant byte address 0x4 - core index']
  #allocation1 [shape = 'u32[144,128]{1,0:T(1,128)}', space=vmem, size = 0x12000, scoped, tag = 'internal scratch']
  %s0 = inlined_call_operand.vmem [shape: f32[48,32], index: 0, kind: input, shape index: {}]
  %s1 = inlined_call_operand.vmem [shape: f32[32,64], index: 1, kind: input, shape index: {}]
  %s2 = inlined_call_operand.vmem [shape: f32[1,64], index: 2, kind: input, shape index: {}]
  %s3 = inlined_call_operand.vmem [shape: f32[192,4], index: 3, kind: input, shape index: {}]
  %s4 = inlined_call_operand.vmem [shape: f32[16,4], index: 4, kind: output, shape index: {}]
  %s5 = sld [smem:[#allocation0]]
  $region26: #{tpu_custom_call.1} parent=0
    _
  %s7 = ssub.s32 1, %s5
  %s8 = scalar_select 0, %s7, %s5
  // Predicated region
  $region2: #{tpu_custom_call.1} parent=0 // pred_check
    _
  $region3: #{tpu_custom_call.1} parent=0 // pred_check_branch
    %10 = sbr.rel (0) target = $region5
  $region4: #{tpu_custom_call.1} parent=0 // pred_region
    _
  $region5: #{tpu_custom_call.1} parent=0 // pred_fallthru
    _
  // Predicated region
  $region6: #{tpu_custom_call.1} parent=0 // pred_check
    _
  $region7: #{tpu_custom_call.1} parent=0 // pred_check_branch
    %12 = sbr.rel (0) target = $region9
  $region8: #{tpu_custom_call.1} parent=0 // pred_region
    _
  $region9: #{tpu_custom_call.1} parent=0 // pred_fallthru
    _
  // Predicated region
  $region10: #{tpu_custom_call.1} parent=0 // pred_check
    _
  $region11: #{tpu_custom_call.1} parent=0 // pred_check_branch
    %14 = sbr.rel (0) target = $region13
  $region12: #{tpu_custom_call.1} parent=0 // pred_region
    _
  $region13: #{tpu_custom_call.1} parent=0 // pred_fallthru
    _
  // Predicated region
  $region14: #{tpu_custom_call.1} parent=0 // pred_check
    _
  $region15: #{tpu_custom_call.1} parent=0 // pred_check_branch
    %16 = sbr.rel (0) target = $region17
  $region16: #{tpu_custom_call.1} parent=0 // pred_region
    _
  $region17: #{tpu_custom_call.1} parent=0 // pred_fallthru
    _
  %v17 = vld [vmem:[%s0] sm:$0xff]
  %v18 = vld [vmem:[%s0 + $0x8] sm:$0xff]
  %v19 = vld [vmem:[%s0 + $0x10] sm:$0xff]
  %v20 = vld [vmem:[%s0 + $0x18] sm:$0xff]
  %v21 = vld [vmem:[%s0 + $0x20] sm:$0xff]
  %v22 = vld [vmem:[%s0 + $0x28] sm:$0xff]
  %v23 = vld [vmem:[%s1] sm:$0xff]
  %v24 = vld [vmem:[%s1 + $0x8] sm:$0xff]
  %v25 = vld [vmem:[%s1 + $0x10] sm:$0xff]
  %v26 = vld [vmem:[%s1 + $0x18] sm:$0xff]
  %v27 = vld [vmem:[%s2] sm:$0x1]
  %v29 = vlaneseq
  %v30 = vshrl.u32 %v29, 7
  %v31 = vsub.s32 0, %v30
  %v32 = vrot.slane %v27, %v31
  %vm34 = vcmask 261120
  %v36 = vsel %vm34, %v17, 0
  %v39 = vsel %vm34, %v18, 0
  %v42 = vsel %vm34, %v19, 0
  %v45 = vsel %vm34, %v20, 0
  %v48 = vsel %vm34, %v21, 0
  %v51 = vsel %vm34, %v22, 0
  %53 = vmatprep.subr.mxu0 0.0
  %54 = vmatpush1.msra.mxu0 0.0
  %55 = vmatprep.subr.mxu0 0.0
  %56 = vmatpush1.msra.mxu0 0.0
  %57 = vmatprep.subr.mxu0 0.0
  %58 = vmatpush1.msra.mxu0 0.0
  %59 = vmatprep.subr.mxu0 0.0
  %60 = vmatpush1.msra.mxu0 0.0
  %61 = vmatprep.subr.mxu0 0.0
  %62 = vmatpush1.msra.mxu0 0.0
  %63 = vmatprep.subr.mxu0 0.0
  %64 = vmatpush1.msra.mxu0 0.0
  %65 = vmatprep.subr.mxu0 0.0
  %66 = vmatpush1.msra.mxu0 0.0
  %67 = vmatprep.subr.mxu0 0.0
  %68 = vmatpush1.msra.mxu0 0.0
  %69 = vmatprep.subr.mxu0 0.0
  %70 = vmatpush1.msra.mxu0 0.0
  %71 = vmatprep.subr.mxu0 0.0
  %72 = vmatpush1.msra.mxu0 0.0
  %73 = vmatprep.subr.mxu0 0.0
  %74 = vmatpush1.msra.mxu0 0.0
  %75 = vmatprep.subr.mxu0 0.0
  %76 = vmatpush1.msra.mxu0 0.0
  %77 = vmatprep.subr.mxu0 0.0
  %78 = vmatpush1.msra.mxu0 %v26
  %79 = vmatprep.subr.mxu0 0.0
  %80 = vmatpush1.msra.mxu0 %v25
  %81 = vmatprep.subr.mxu0 0.0
  %82 = vmatpush1.msra.mxu0 %v24
  %83 = vmatprep.subr.mxu0 0.0
  %84 = vmatpush1.msra.mxu0 %v23
  %85 = vmatprep.subr.mxu0 0.0
  %86 = vmatpush2.msra.mxu0 0.0
  %87 = vmatprep.subr.mxu0 0.0
  %88 = vmatpush2.msra.mxu0 0.0
  %89 = vmatprep.subr.mxu0 0.0
  %90 = vmatpush2.msra.mxu0 0.0
  %91 = vmatprep.subr.mxu0 0.0
  %92 = vmatpush2.msra.mxu0 0.0
  %93 = vmatprep.subr.mxu0 0.0
  %94 = vmatpush2.msra.mxu0 0.0
  %95 = vmatprep.subr.mxu0 0.0
  %96 = vmatpush2.msra.mxu0 0.0
  %97 = vmatprep.subr.mxu0 0.0
  %98 = vmatpush2.msra.mxu0 0.0
  %99 = vmatprep.subr.mxu0 0.0
  %100 = vmatpush2.msra.mxu0 0.0
  %101 = vmatprep.subr.mxu0 0.0
  %102 = vmatpush2.msra.mxu0 0.0
  %103 = vmatprep.subr.mxu0 0.0
  %104 = vmatpush2.msra.mxu0 0.0
  %105 = vmatprep.subr.mxu0 0.0
  %106 = vmatpush2.msra.mxu0 0.0
  %107 = vmatprep.subr.mxu0 0.0
  %108 = vmatpush2.msra.mxu0 0.0
  %109 = vmatprep.subr.mxu0 0.0
  %110 = vmatpush2.msra.mxu0 0.0
  %111 = vmatprep.subr.mxu0 0.0
  %112 = vmatpush2.msra.mxu0 0.0
  %113 = vmatprep.subr.mxu0 0.0
  %114 = vmatpush2.msra.mxu0 0.0
  %115 = vmatprep.subr.mxu0 0.0
  %116 = vmatpush2.msra.mxu0 0.0
  %117 = vmatprep.mubr.f32.mxu0 0.0
  %118 = vmatmul.mubr.f32.gmra.mxu0 %v36
  %v119 = vpop.f32.mrf.mxu0
  %v120 = vadd.f32 %v32, %v119
  %v121 = vpop.f32.mrf.mxu0
  %122 = vmatprep.mubr.f32.mxu0 0.0
  %123 = vmatmul.mubr.f32.gmra.mxu0 %v39
  %v124 = vpop.f32.mrf.mxu0
  %v125 = vadd.f32 %v32, %v124
  %v126 = vpop.f32.mrf.mxu0
  %127 = vmatprep.mubr.f32.mxu0 0.0
  %128 = vmatmul.mubr.f32.gmra.mxu0 %v42
  %v129 = vpop.f32.mrf.mxu0
  %v130 = vadd.f32 %v32, %v129
  %v131 = vpop.f32.mrf.mxu0
  %132 = vmatprep.mubr.f32.mxu0 0.0
  %133 = vmatmul.mubr.f32.gmra.mxu0 %v45
  %v134 = vpop.f32.mrf.mxu0
  %v135 = vadd.f32 %v32, %v134
  %v136 = vpop.f32.mrf.mxu0
  %137 = vmatprep.mubr.f32.mxu0 0.0
  %138 = vmatmul.mubr.f32.gmra.mxu0 %v48
  %v139 = vpop.f32.mrf.mxu0
  %v140 = vadd.f32 %v32, %v139
  %v141 = vpop.f32.mrf.mxu0
  %142 = vmatprep.mubr.f32.mxu0 0.0
  %143 = vmatmul.mubr.f32.gmra.mxu0 %v51
  %v144 = vpop.f32.mrf.mxu0
  %v145 = vadd.f32 %v32, %v144
  %v146 = vpop.f32.mrf.mxu0
  %147 = vdwg.mxu0
  %vm148 = vcmask 523264
  %v149 = vsel %vm148, %v120, -inf
  %150 = vmax.xlane.f32.xlu0 %v149
  %v151 = vpop.xlane.xlu0 %150
  %v152 = vsel %vm148, %v125, -inf
  %153 = vmax.xlane.f32.xlu0 %v152
  %v154 = vpop.xlane.xlu0 %153
  %v155 = vsel %vm148, %v130, -inf
  %156 = vmax.xlane.f32.xlu0 %v155
  %v157 = vpop.xlane.xlu0 %156
  %v158 = vsel %vm148, %v135, -inf
  %159 = vmax.xlane.f32.xlu0 %v158
  %v160 = vpop.xlane.xlu0 %159
  %v161 = vsel %vm148, %v140, -inf
  %162 = vmax.xlane.f32.xlu0 %v161
  %v163 = vpop.xlane.xlu0 %162
  %v164 = vsel %vm148, %v145, -inf
  %165 = vmax.xlane.f32.xlu0 %v164
  %v166 = vpop.xlane.xlu0 %165
  %v167 = vsub.f32 %v120, %v151
  %v168 = vsub.f32 %v125, %v154
  %v169 = vsub.f32 %v130, %v157
  %v170 = vsub.f32 %v135, %v160
  %v171 = vsub.f32 %v140, %v163
  %v172 = vsub.f32 %v145, %v166
  %v173 = vmul.f32 %v167, 1.442695
  %v174 = vpow.pop %v173
  %v175 = vmul.f32 %v168, 1.442695
  %v176 = vpow.pop %v175
  %v177 = vmul.f32 %v169, 1.442695
  %v178 = vpow.pop %v177
  %v179 = vmul.f32 %v170, 1.442695
  %v180 = vpow.pop %v179
  %v181 = vmul.f32 %v171, 1.442695
  %v182 = vpow.pop %v181
  %v183 = vmul.f32 %v172, 1.442695
  %v184 = vpow.pop %v183
  %v185 = vsel %vm148, %v174, 0.0
  %186 = vadd.xlane.f32.xlu0 %v185
  %v187 = vpop.xlane.xlu0 %186
  %v188 = vsel %vm148, %v176, 0.0
  %189 = vadd.xlane.f32.xlu0 %v188
  %v190 = vpop.xlane.xlu0 %189
  %v191 = vsel %vm148, %v178, 0.0
  %192 = vadd.xlane.f32.xlu0 %v191
  %v193 = vpop.xlane.xlu0 %192
  %v194 = vsel %vm148, %v180, 0.0
  %195 = vadd.xlane.f32.xlu0 %v194
  %v196 = vpop.xlane.xlu0 %195
  %v197 = vsel %vm148, %v182, 0.0
  %198 = vadd.xlane.f32.xlu0 %v197
  %v199 = vpop.xlane.xlu0 %198
  %v200 = vsel %vm148, %v184, 0.0
  %201 = vadd.xlane.f32.xlu0 %v200
  %v202 = vpop.xlane.xlu0 %201
  %v203 = vrcp.pop %v187
  %v204 = vrcp.pop %v190
  %v205 = vrcp.pop %v193
  %v206 = vrcp.pop %v196
  %v207 = vrcp.pop %v199
  %v208 = vrcp.pop %v202
  %v209 = vmul.f32 %v174, %v203
  %v210 = vmul.f32 %v176, %v204
  %v211 = vmul.f32 %v178, %v205
  %v212 = vmul.f32 %v180, %v206
  %v213 = vmul.f32 %v182, %v207
  %v214 = vmul.f32 %v184, %v208
  %217 = vrot.lane.b32.xlu0 %v211, 64
  %v218 = vpop.permute.xlu0 %217
  %219 = vrot.lane.b32.xlu0 %v212, 64
  %v220 = vpop.permute.xlu0 %219
  %v223 = vsel %vm148, %v209, %v218
  %v224 = vsel %vm148, %v210, %v220
  %v225 = vld [vmem:[%s3] sm:$0xff]
  %v226 = vld [vmem:[%s3 + $0x8] sm:$0xff]
  %v227 = vld [vmem:[%s3 + $0x10] sm:$0xff]
  %v228 = vld [vmem:[%s3 + $0x18] sm:$0xff]
  %v229 = vld [vmem:[%s3 + $0x20] sm:$0xff]
  %v230 = vld [vmem:[%s3 + $0x28] sm:$0xff]
  %v231 = vld [vmem:[%s3 + $0x30] sm:$0xff]
  %v232 = vld [vmem:[%s3 + $0x38] sm:$0xff]
  %v233 = vld [vmem:[%s3 + $0x40] sm:$0xff]
  %v234 = vld [vmem:[%s3 + $0x48] sm:$0xff]
  %v235 = vld [vmem:[%s3 + $0x50] sm:$0xff]
  %v236 = vld [vmem:[%s3 + $0x58] sm:$0xff]
  %v237 = vld [vmem:[%s3 + $0x60] sm:$0xff]
  %v238 = vld [vmem:[%s3 + $0x68] sm:$0xff]
  %v239 = vld [vmem:[%s3 + $0x70] sm:$0xff]
  %v240 = vld [vmem:[%s3 + $0x78] sm:$0xff]
  %v241 = vld [vmem:[%s3 + $0x80] sm:$0xff]
  %v242 = vld [vmem:[%s3 + $0x88] sm:$0xff]
  %v243 = vld [vmem:[%s3 + $0x90] sm:$0xff]
  %v244 = vld [vmem:[%s3 + $0x98] sm:$0xff]
  %v245 = vld [vmem:[%s3 + $0xa0] sm:$0xff]
  %v246 = vld [vmem:[%s3 + $0xa8] sm:$0xff]
  %v247 = vld [vmem:[%s3 + $0xb0] sm:$0xff]
  %v248 = vld [vmem:[%s3 + $0xb8] sm:$0xff]
  %v250 = vsel %vm148, %v213, 0
  %v253 = vsel %vm148, %v214, 0
  %255 = vmatprep.subr.mxu0 0.0
  %256 = vmatpush1.msra.mxu0 %v240
  %257 = vmatprep.subr.mxu0 0.0
  %258 = vmatpush1.msra.mxu0 %v239
  %259 = vmatprep.subr.mxu0 0.0
  %260 = vmatpush1.msra.mxu0 %v238
  %261 = vmatprep.subr.mxu0 0.0
  %262 = vmatpush1.msra.mxu0 %v237
  %263 = vmatprep.subr.mxu0 0.0
  %264 = vmatpush1.msra.mxu0 %v236
  %265 = vmatprep.subr.mxu0 0.0
  %266 = vmatpush1.msra.mxu0 %v235
  %267 = vmatprep.subr.mxu0 0.0
  %268 = vmatpush1.msra.mxu0 %v234
  %269 = vmatprep.subr.mxu0 0.0
  %270 = vmatpush1.msra.mxu0 %v233
  %271 = vmatprep.subr.mxu0 0.0
  %272 = vmatpush1.msra.mxu0 %v232
  %273 = vmatprep.subr.mxu0 0.0
  %274 = vmatpush1.msra.mxu0 %v231
  %275 = vmatprep.subr.mxu0 0.0
  %276 = vmatpush1.msra.mxu0 %v230
  %277 = vmatprep.subr.mxu0 0.0
  %278 = vmatpush1.msra.mxu0 %v229
  %279 = vmatprep.subr.mxu0 0.0
  %280 = vmatpush1.msra.mxu0 %v228
  %281 = vmatprep.subr.mxu0 0.0
  %282 = vmatpush1.msra.mxu0 %v227
  %283 = vmatprep.subr.mxu0 0.0
  %284 = vmatpush1.msra.mxu0 %v226
  %285 = vmatprep.subr.mxu0 0.0
  %286 = vmatpush1.msra.mxu0 %v225
  %287 = vmatprep.subr.mxu0 0.0
  %288 = vmatpush2.msra.mxu0 0.0
  %289 = vmatprep.subr.mxu0 0.0
  %290 = vmatpush2.msra.mxu0 0.0
  %291 = vmatprep.subr.mxu0 0.0
  %292 = vmatpush2.msra.mxu0 0.0
  %293 = vmatprep.subr.mxu0 0.0
  %294 = vmatpush2.msra.mxu0 0.0
  %295 = vmatprep.subr.mxu0 0.0
  %296 = vmatpush2.msra.mxu0 0.0
  %297 = vmatprep.subr.mxu0 0.0
  %298 = vmatpush2.msra.mxu0 0.0
  %299 = vmatprep.subr.mxu0 0.0
  %300 = vmatpush2.msra.mxu0 0.0
  %301 = vmatprep.subr.mxu0 0.0
  %302 = vmatpush2.msra.mxu0 0.0
  %303 = vmatprep.subr.mxu0 0.0
  %304 = vmatpush2.msra.mxu0 %v248
  %305 = vmatprep.subr.mxu0 0.0
  %306 = vmatpush2.msra.mxu0 %v247
  %307 = vmatprep.subr.mxu0 0.0
  %308 = vmatpush2.msra.mxu0 %v246
  %309 = vmatprep.subr.mxu0 0.0
  %310 = vmatpush2.msra.mxu0 %v245
  %311 = vmatprep.subr.mxu0 0.0
  %312 = vmatpush2.msra.mxu0 %v244
  %313 = vmatprep.subr.mxu0 0.0
  %314 = vmatpush2.msra.mxu0 %v243
  %315 = vmatprep.subr.mxu0 0.0
  %316 = vmatpush2.msra.mxu0 %v242
  %317 = vmatprep.subr.mxu0 0.0
  %318 = vmatpush2.msra.mxu0 %v241
  %319 = vmatprep.mubr.f32.mxu0 %v250
  %320 = vmatmul.mubr.f32.gmra.mxu0 %v223
  %v321 = vpop.f32.mrf.mxu0
  %v322 = vadd.f32 0.0, %v321
  %v323 = vpop.f32.mrf.mxu0
  %324 = vmatprep.mubr.f32.mxu0 %v253
  %325 = vmatmul.mubr.f32.gmra.mxu0 %v224
  %v326 = vpop.f32.mrf.mxu0
  %v327 = vadd.f32 0.0, %v326
  %v328 = vpop.f32.mrf.mxu0
  %329 = vdwg.mxu0
  %vm330 = vcmask 31744
  %331 = vst.msk [vmem:[%s4] sm:$0xff] %vm330, %v322
  %332 = vst.msk [vmem:[%s4 + $0x8] sm:$0xff] %vm330, %v327
  // Predicated region
  $region18: #{tpu_custom_call.1} parent=0 // pred_check
    _
  $region19: #{tpu_custom_call.1} parent=0 // pred_check_branch
    %334 = sbr.rel (0) target = $region21
  $region20: #{tpu_custom_call.1} parent=0 // pred_region
    _
  $region21: #{tpu_custom_call.1} parent=0 // pred_fallthru
    _
  // Predicated region
  $region22: #{tpu_custom_call.1} parent=0 // pred_check
    _
  $region23: #{tpu_custom_call.1} parent=0 // pred_check_branch
    %336 = sbr.rel (0) target = $region25
  $region24: #{tpu_custom_call.1} parent=0 // pred_region
    _
  $region25: #{tpu_custom_call.1} parent=0 // pred_fallthru
    _

</llo_original>
